<compile_context>
chip_gen: v6e
topology: v6e:2x2x1
jax: 0.10.0
libtpu: 0.0.40
codegen_flags: <defaults>
</compile_context>

<pallas_src>
import math

import jax
import jax.numpy as jnp
from jax.experimental import pallas as pl
from jax.experimental.pallas import tpu as pltpu


def _round_up(x, m):
    return ((x + m - 1) // m) * m


def _vmem_capacity_bytes():
    """Physical VMEM capacity per TensorCore; conservative fallback."""
    try:
        info = pltpu.get_tpu_info()
        cap = getattr(info, "vmem_capacity_bytes", None)
        if cap:
            return int(cap)
    except Exception:
        pass
    return 64 << 20  # assume the smallest generation (v7x: 64 MiB / TC)


def _matmul_kernel_accum_out(x_ref, w_ref, o_ref):
    """f32 output: accumulate directly into the resident output tile."""
    @pl.when(pl.program_id(2) == 0)
    def _():
        o_ref[...] = jnp.zeros_like(o_ref)

    o_ref[...] += jnp.dot(
        x_ref[...], w_ref[...], preferred_element_type=jnp.float32
    )


def _matmul_kernel_scratch(x_ref, w_ref, o_ref, acc_ref):
    """Low-precision output: f32 scratch accumulator, cast/store at k==last."""
    @pl.when(pl.program_id(2) == 0)
    def _():
        acc_ref[...] = jnp.zeros_like(acc_ref)

    acc_ref[...] += jnp.dot(
        x_ref[...], w_ref[...], preferred_element_type=jnp.float32
    )

    @pl.when(pl.program_id(2) == pl.num_programs(2) - 1)
    def _():
        o_ref[...] = acc_ref[...].astype(o_ref.dtype)


def linear_forward(x, weight, *, compute_dtype=None, tm=None, tn=None, tk=None):
    """Computes x @ weight with a tiled Pallas TPU kernel.

    x:      (..., out_features)   -- literal module semantics
    weight: (out_features, in_features)
    return: (..., in_features)

    compute_dtype: optional MXU operand dtype (e.g. jnp.bfloat16).  bf16
      operands with f32 accumulation are ~4x+ faster on v5e/v6e/v7x MXUs and
      halve operand HBM traffic, at a small precision cost; default None keeps
      strict f32 semantics.
    """
    orig_shape = x.shape
    k = orig_shape[-1]
    x2d = x.reshape(-1, k)                     # flatten leading dims
    m = x2d.shape[0]
    kw, n = weight.shape
    assert kw == k, f"inner dims mismatch: {k} vs {kw}"

    out_dtype = jnp.promote_types(x.dtype, weight.dtype)

    # ---- Generation-tuned tile targets -------------------------------------
    cap = _vmem_capacity_bytes()
    big_vmem = cap >= (96 << 20)               # v5e/v6e: 128 MiB, v7x: 64 MiB
    if tm is None:
        tm = 512
    if tn is None:
        tn = 2048 if big_vmem else 1024        # lane-dense output is the lever
    if tk is None:
        tk = 512
    # v5e/v6e scoped VMEM defaults (16/32 MiB) are too small for these tiles.
    vmem_limit = (64 << 20) if big_vmem else None

    # ---- M tile: multiple of 8 sublanes; NO wrapper-side padding -----------
    tm = _round_up(min(tm, _round_up(m, 8)), 8)

    # ---- N tile: multiple of 128 lanes (or the full dim); no padding -------
    if n <= tn:
        tn = n
    else:
        tn = max(128, (tn // 128) * 128)

    # v7x megacore: keep >= 2 blocks on some "parallel" axis when possible.
    if pl.cdiv(m, tm) == 1 and pl.cdiv(n, tn) == 1 and n >= 512:
        tn = max(256, _round_up(pl.cdiv(n, 2), 128))

    # ---- K tile + (tiny) zero-pad of the contraction remainder -------------
    w = weight
    if k <= tk:
        tk = k                                 # single K block, full dim
        kp = k
    else:
        kp = _round_up(k, 128)                 # pad K by < 128 at most
        cand = (min(tk, kp) // 128) * 128
        tk = 128
        while cand >= 128:
            if kp % cand == 0:
                tk = cand
                break
            cand -= 128
        if kp != k:
            # Zero-pad the contraction remainder in BOTH operands so nothing
            # spurious enters the reduction (valid output rows/cols only ever
            # see zero * value).
            x2d = jnp.pad(x2d, ((0, 0), (0, kp - k)))
            # TODO(synk): for a real layer the (static) weight should be
            # pre-padded / pre-laid-out once outside the forward path.
            w = jnp.pad(weight, ((0, kp - k), (0, 0)))

    if compute_dtype is not None and x2d.dtype != compute_dtype:
        x2d = x2d.astype(compute_dtype)
        w = w.astype(compute_dtype)

    gm, gn, gk = pl.cdiv(m, tm), pl.cdiv(n, tn), kp // tk
    grid = (gm, gn, gk)

    # Real traffic estimate: A re-read per N-block, B re-read per M-block.
    x_item = jnp.dtype(x2d.dtype).itemsize
    w_item = jnp.dtype(w.dtype).itemsize
    o_item = jnp.dtype(out_dtype).itemsize
    cost = pl.CostEstimate(
        flops=2 * m * k * n,
        transcendentals=0,
        bytes_accessed=(m * kp * x_item * gn
                        + kp * n * w_item * gm
                        + m * n * o_item),
    )

    if out_dtype == jnp.float32:
        kernel = _matmul_kernel_accum_out      # accumulate in the output tile
        scratch_shapes = []
    else:
        kernel = _matmul_kernel_scratch        # f32 scratch, cast at the end
        scratch_shapes = [pltpu.VMEM((tm, tn), jnp.float32)]

    out = pl.pallas_call(
        kernel,
        out_shape=jax.ShapeDtypeStruct((m, n), out_dtype),
        grid_spec=pltpu.PrefetchScalarGridSpec(
            num_scalar_prefetch=0,
            grid=grid,
            in_specs=[
                pl.BlockSpec((tm, tk), lambda i, j, kk: (i, kk)),
                pl.BlockSpec((tk, tn), lambda i, j, kk: (kk, j)),
            ],
            out_specs=pl.BlockSpec((tm, tn), lambda i, j, kk: (i, j)),
            scratch_shapes=scratch_shapes,
        ),
        compiler_params=pltpu.CompilerParams(
            dimension_semantics=("parallel", "parallel", "arbitrary"),
            vmem_limit_bytes=vmem_limit,
        ),
        cost_estimate=cost,
    )(x2d, w)

    return out.reshape(*orig_shape[:-1], n)


def init_he(in_features, out_features, key, dtype=jnp.float32):
    """Deterministic HE init matching init_HE: N(0, sqrt(2/in_features)),
    shape (out_features, in_features)."""
    std = math.sqrt(2.0 / in_features)
    return (std * jax.random.normal(key, (out_features, in_features))).astype(dtype)


if __name__ == "__main__":
    in_features = 64
    out_features = 32
    batch = 4

    key = jax.random.PRNGKey(0)
    k_w, k_x = jax.random.split(key)

    weight = init_he(in_features, out_features, k_w)             # (32, 64)
    bias = jnp.zeros((out_features,), jnp.float32)               # unused (see note)

    # Per the literal forward, X's last dim must equal out_features.
    x = jax.random.normal(k_x, (batch, out_features), jnp.float32)   # (4, 32)

    y = jax.block_until_ready(linear_forward(x, weight))         # (4, 64)
    y_ref = x @ weight
    assert y.shape == (batch, in_features)
    assert jnp.allclose(y, y_ref, atol=1e-5, rtol=1e-5), "mismatch vs reference"

    # Larger shape: exercises multi-K-step accumulation, the K-remainder
    # zero-pad path, and partial (masked) M tiles without any wrapper-side
    # M/N padding copies.
    M2, K2, N2 = 300, 640, 384
    kx2, kw2 = jax.random.split(k_x)
    xb = jax.random.normal(kx2, (M2, K2), jnp.float32)
    wb = jax.random.normal(kw2, (K2, N2), jnp.float32)
    yb = jax.block_until_ready(linear_forward(xb, wb))
    yb_ref = xb @ wb
    assert jnp.allclose(yb, yb_ref, atol=5e-3, rtol=5e-3), "tiled f32 mismatch"

    # Optional bf16-MXU path (f32 accumulation): the big compute-side win on
    # all generations, at a documented precision cost.  Compared against a
    # bf16-operand reference.
    yh = jax.block_until_ready(
        linear_forward(xb, wb, compute_dtype=jnp.bfloat16))
    yh_ref = jnp.dot(xb.astype(jnp.bfloat16), wb.astype(jnp.bfloat16),
                     preferred_element_type=jnp.float32)
    assert jnp.allclose(yh, yh_ref, atol=1e-1, rtol=1e-2), "bf16 path mismatch"

    print("KERNEL_OK")
</pallas_src>

<mosaic_0001>
module attributes {stable_mosaic.version = 11 : i64} {
  func.func @_matmul_kernel_accum_out(%arg0: i32, %arg1: i32, %arg2: i32, %arg3: memref<8x32xf32, #tpu.memory_space<vmem>>, %arg4: memref<32x64xf32, #tpu.memory_space<vmem>>, %arg5: memref<8x64xf32, #tpu.memory_space<vmem>>) attributes {dimension_semantics = [#tpu.dimension_semantics<parallel>, #tpu.dimension_semantics<parallel>, #tpu.dimension_semantics<arbitrary>], iteration_bounds = array<i64: 1, 1, 1>, scalar_prefetch = 0 : i64, scratch_operands = 0 : i64, tpu.core_type = #tpu.core_type<tc>, window_params = [{transform_indices = @transform_0, window_bounds = array<i64: 8, 32>}, {transform_indices = @transform_1, window_bounds = array<i64: 32, 64>}, {transform_indices = @transform_2, window_bounds = array<i64: 8, 64>}]} {
    %c0_i32 = arith.constant 0 : i32
    %0 = arith.cmpi eq, %arg2, %c0_i32 : i32
    %1 = arith.extui %0 : i1 to i32
    %c0_i32_0 = arith.constant 0 : i32
    %2 = arith.cmpi ne, %1, %c0_i32_0 : i32
    scf.if %2 {
      %cst_8 = arith.constant 0.000000e+00 : f32
      %9 = vector.broadcast %cst_8 : f32 to vector<8x64xf32>
      %c0_9 = arith.constant 0 : index
      %c0_10 = arith.constant 0 : index
      %10 = vector.load %arg5[%c0_9, %c0_10] : memref<8x64xf32, #tpu.memory_space<vmem>>, vector<8x64xf32>
      tpu.vector_store %arg5[%c0_9, %c0_10], %9 {strides = array<i32>} : memref<8x64xf32, #tpu.memory_space<vmem>>, vector<8x64xf32>,
    } else {
    }
    %c0 = arith.constant 0 : index
    %c0_1 = arith.constant 0 : index
    %3 = vector.load %arg5[%c0, %c0_1] : memref<8x64xf32, #tpu.memory_space<vmem>>, vector<8x64xf32>
    %c0_2 = arith.constant 0 : index
    %c0_3 = arith.constant 0 : index
    %4 = vector.load %arg3[%c0_2, %c0_3] : memref<8x32xf32, #tpu.memory_space<vmem>>, vector<8x32xf32>
    %c0_4 = arith.constant 0 : index
    %c0_5 = arith.constant 0 : index
    %5 = vector.load %arg4[%c0_4, %c0_5] : memref<32x64xf32, #tpu.memory_space<vmem>>, vector<32x64xf32>
    %cst = arith.constant dense<0.000000e+00> : vector<8x64xf32>
    %6 = tpu.matmul %4, %5, %cst {dimension_numbers = #tpu.dot_dimension_numbers<[1], [0], [0], [1], [0, 0, 1, 1], [], []>} : vector<8x32xf32>, vector<32x64xf32>, vector<8x64xf32> -> vector<8x64xf32>
    %7 = arith.addf %3, %6 : vector<8x64xf32>
    %c0_6 = arith.constant 0 : index
    %c0_7 = arith.constant 0 : index
    %8 = vector.load %arg5[%c0_6, %c0_7] : memref<8x64xf32, #tpu.memory_space<vmem>>, vector<8x64xf32>
    tpu.vector_store %arg5[%c0_6, %c0_7], %7 {strides = array<i32>} : memref<8x64xf32, #tpu.memory_space<vmem>>, vector<8x64xf32>,
    return
  }
  func.func @transform_0(%arg0: i32, %arg1: i32, %arg2: i32) -> (i32, i32) {
    %c0_i32 = arith.constant 0 : i32
    return %arg0, %arg2 : i32, i32
  }
  func.func @transform_1(%arg0: i32, %arg1: i32, %arg2: i32) -> (i32, i32) {
    %c0_i32 = arith.constant 0 : i32
    return %arg2, %arg1 : i32, i32
  }
  func.func @transform_2(%arg0: i32, %arg1: i32, %arg2: i32) -> (i32, i32) {
    %c0_i32 = arith.constant 0 : i32
    return %arg0, %arg1 : i32, i32
  }
}

</mosaic_0001>

<llo_original>
// kernel: tpu_custom_call.1
$region0: #{tpu_custom_call.1}
  #allocation0 [shape = 'u32[]', space=smem, size = 0x4, offset = 0x4, fixed_abs, tag = 'smem constant byte address 0x4 - core index']
  #allocation1 [shape = 'u32[144,128]{1,0:T(1,128)}', space=vmem, size = 0x12000, scoped, tag = 'internal scratch']
  %s0 = inlined_call_operand.hbm [shape: f32[4,32], index: 0, kind: input, shape index: {}]
  %s1 = inlined_call_operand.hbm [shape: f32[32,64], index: 1, kind: input, shape index: {}]
  %s2 = inlined_call_operand.hbm [shape: f32[4,64], index: 2, kind: output, shape index: {}]
  %s3 = sld [smem:[#allocation0]]
  $region30: #{tpu_custom_call.1} parent=0
    _
  %s5 = ssub.s32 1, %s3
  %s6 = scalar_select 0, %s5, %s3
  $region1: #{tpu_custom_call.1} parent=0
    #allocation2 [shape = 'u8[4096]{0}', space=vmem, size = 0x1000, scoped, tag = 'input window, operand 0, single buffered']
    #allocation3 [shape = 's32[1]{0}', space=sflag, size = 0x4, scoped, tag = 'scoped memory for tpu_custom_call.1']
    #allocation4 [shape = 's32[1]{0}', space=sflag, size = 0x4, scoped, tag = 'scoped memory for tpu_custom_call.1']
    #allocation5 [shape = 'u8[16384]{0}', space=vmem, size = 0x4000, scoped, tag = 'input window, operand 1, single buffered']
    #allocation6 [shape = 's32[1]{0}', space=sflag, size = 0x4, scoped, tag = 'scoped memory for tpu_custom_call.1']
    #allocation7 [shape = 'u8[4096]{0}', space=vmem, size = 0x1000, scoped, tag = 'output window, operand 0, single buffered']
    %7 = vsyncpa [#allocation3], 0
    %8 = vsyncpa [#allocation6], 0
    %9 = vsyncpa [#allocation4], 0
    // Predicated region
    $region2: #{tpu_custom_call.1} parent=1 // pred_check
      _
    $region3: #{tpu_custom_call.1} parent=1 // pred_check_branch
      %11 = sbr.rel (0) target = $region5
    $region4: #{tpu_custom_call.1} parent=1 // pred_region
      %s13 = ssub.s32 128, 64
      %14 = vsyncadd [#allocation3], %s13
      %s15 = sshll.u32 [#allocation2], 4
      %s16 = int_to_ptr.vmem [resolvable:$true] %s15
      %21 = dma.hbm_to_vmem [thread:$0]  %s0, 64, %s16, [#allocation3], 64, 64, 4
    $region5: #{tpu_custom_call.1} parent=1 // pred_fallthru
      _
    // Predicated region
    $region6: #{tpu_custom_call.1} parent=1 // pred_check
      _
    $region7: #{tpu_custom_call.1} parent=1 // pred_check_branch
      %23 = sbr.rel (0) target = $region9
    $region8: #{tpu_custom_call.1} parent=1 // pred_region
      %s25 = ssub.s32 512, 512
      %26 = vsyncadd [#allocation6], %s25
      %s27 = sshll.u32 [#allocation5], 4
      %s28 = int_to_ptr.vmem [resolvable:$true] %s27
      %33 = dma.hbm_to_vmem [thread:$0]  %s1, 512, %s28, [#allocation6], 128, 128, 8
    $region9: #{tpu_custom_call.1} parent=1 // pred_fallthru
      _
    // Predicated region
    $region10: #{tpu_custom_call.1} parent=1 // pred_check
      _
    $region11: #{tpu_custom_call.1} parent=1 // pred_check_branch
      %35 = sbr.rel (0) target = $region13
    $region12: #{tpu_custom_call.1} parent=1 // pred_region
      %36 = dma.done [#allocation3], 128
    $region13: #{tpu_custom_call.1} parent=1 // pred_fallthru
      _
    // Predicated region
    $region14: #{tpu_custom_call.1} parent=1 // pred_check
      _
    $region15: #{tpu_custom_call.1} parent=1 // pred_check_branch
      %38 = sbr.rel (0) target = $region17
    $region16: #{tpu_custom_call.1} parent=1 // pred_region
      %39 = dma.done [#allocation6], 512
    $region17: #{tpu_custom_call.1} parent=1 // pred_fallthru
      _
    %p40 = scmp.eq.s32.totalorder 0, 0
    // Predicated region
    $region18: #{tpu_custom_call.1} parent=1 // pred_check
      %p41 = pneg %p40
    $region19: #{tpu_custom_call.1} parent=1 // pred_check_branch
      %43 = sbr.rel (%p41) target = $region21
    $region20: #{tpu_custom_call.1} parent=1 // pred_region
      %vm44 = vcmask 523264
      %45 = vst.msk [vmem:[#allocation7] sm:$0xff] %vm44, 0.0
    $region21: #{tpu_custom_call.1} parent=1 // pred_fallthru
      _
    %v46 = vld [vmem:[#allocation7] sm:$0xff]
    %v47 = vld [vmem:[#allocation2] sm:$0xff]
    %v48 = vld [vmem:[#allocation5] sm:$0xff]
    %v49 = vld [vmem:[#allocation5 + $0x8] sm:$0xff]
    %v50 = vld [vmem:[#allocation5 + $0x10] sm:$0xff]
    %v51 = vld [vmem:[#allocation5 + $0x18] sm:$0xff]
    %vm52 = vcmask 261120
    %v54 = vsel %vm52, %v47, 0
    %56 = vmatprep.subr.mxu0 0.0
    %57 = vmatpush1.msra.mxu0 0.0
    %58 = vmatprep.subr.mxu0 0.0
    %59 = vmatpush1.msra.mxu0 0.0
    %60 = vmatprep.subr.mxu0 0.0
    %61 = vmatpush1.msra.mxu0 0.0
    %62 = vmatprep.subr.mxu0 0.0
    %63 = vmatpush1.msra.mxu0 0.0
    %64 = vmatprep.subr.mxu0 0.0
    %65 = vmatpush1.msra.mxu0 0.0
    %66 = vmatprep.subr.mxu0 0.0
    %67 = vmatpush1.msra.mxu0 0.0
    %68 = vmatprep.subr.mxu0 0.0
    %69 = vmatpush1.msra.mxu0 0.0
    %70 = vmatprep.subr.mxu0 0.0
    %71 = vmatpush1.msra.mxu0 0.0
    %72 = vmatprep.subr.mxu0 0.0
    %73 = vmatpush1.msra.mxu0 0.0
    %74 = vmatprep.subr.mxu0 0.0
    %75 = vmatpush1.msra.mxu0 0.0
    %76 = vmatprep.subr.mxu0 0.0
    %77 = vmatpush1.msra.mxu0 0.0
    %78 = vmatprep.subr.mxu0 0.0
    %79 = vmatpush1.msra.mxu0 0.0
    %80 = vmatprep.subr.mxu0 0.0
    %81 = vmatpush1.msra.mxu0 %v51
    %82 = vmatprep.subr.mxu0 0.0
    %83 = vmatpush1.msra.mxu0 %v50
    %84 = vmatprep.subr.mxu0 0.0
    %85 = vmatpush1.msra.mxu0 %v49
    %86 = vmatprep.subr.mxu0 0.0
    %87 = vmatpush1.msra.mxu0 %v48
    %88 = vmatprep.subr.mxu0 0.0
    %89 = vmatpush2.msra.mxu0 0.0
    %90 = vmatprep.subr.mxu0 0.0
    %91 = vmatpush2.msra.mxu0 0.0
    %92 = vmatprep.subr.mxu0 0.0
    %93 = vmatpush2.msra.mxu0 0.0
    %94 = vmatprep.subr.mxu0 0.0
    %95 = vmatpush2.msra.mxu0 0.0
    %96 = vmatprep.subr.mxu0 0.0
    %97 = vmatpush2.msra.mxu0 0.0
    %98 = vmatprep.subr.mxu0 0.0
    %99 = vmatpush2.msra.mxu0 0.0
    %100 = vmatprep.subr.mxu0 0.0
    %101 = vmatpush2.msra.mxu0 0.0
    %102 = vmatprep.subr.mxu0 0.0
    %103 = vmatpush2.msra.mxu0 0.0
    %104 = vmatprep.subr.mxu0 0.0
    %105 = vmatpush2.msra.mxu0 0.0
    %106 = vmatprep.subr.mxu0 0.0
    %107 = vmatpush2.msra.mxu0 0.0
    %108 = vmatprep.subr.mxu0 0.0
    %109 = vmatpush2.msra.mxu0 0.0
    %110 = vmatprep.subr.mxu0 0.0
    %111 = vmatpush2.msra.mxu0 0.0
    %112 = vmatprep.subr.mxu0 0.0
    %113 = vmatpush2.msra.mxu0 0.0
    %114 = vmatprep.subr.mxu0 0.0
    %115 = vmatpush2.msra.mxu0 0.0
    %116 = vmatprep.subr.mxu0 0.0
    %117 = vmatpush2.msra.mxu0 0.0
    %118 = vmatprep.subr.mxu0 0.0
    %119 = vmatpush2.msra.mxu0 0.0
    %120 = vmatprep.mubr.f32.mxu0 0.0
    %121 = vmatmul.mubr.f32.gmra.mxu0 %v54
    %v122 = vpop.f32.mrf.mxu0
    %v123 = vadd.f32 0.0, %v122
    %v124 = vpop.f32.mrf.mxu0
    %125 = vdwg.mxu0
    %v126 = vadd.f32 %v46, %v123
    %vm127 = vcmask 523264
    %128 = vst.msk [vmem:[#allocation7] sm:$0xff] %vm127, %v126
    // Predicated region
    $region22: #{tpu_custom_call.1} parent=1 // pred_check
      _
    $region23: #{tpu_custom_call.1} parent=1 // pred_check_branch
      %130 = sbr.rel (0) target = $region25
    $region24: #{tpu_custom_call.1} parent=1 // pred_region
      %s132 = ssub.s32 128, 64
      %133 = vsyncadd [#allocation4], %s132
      %s134 = sshll.u32 [#allocation7], 4
      %s135 = int_to_ptr.vmem [resolvable:$true] %s134
      %140 = dma.vmem_to_hbm [thread:$0]  %s135, 64, %s2, [#allocation4], 64, 64, 4
    $region25: #{tpu_custom_call.1} parent=1 // pred_fallthru
      _
    // Predicated region
    $region26: #{tpu_custom_call.1} parent=1 // pred_check
      _
    $region27: #{tpu_custom_call.1} parent=1 // pred_check_branch
      %142 = sbr.rel (0) target = $region29
    $region28: #{tpu_custom_call.1} parent=1 // pred_region
      %143 = dma.done [#allocation4], 128
    $region29: #{tpu_custom_call.1} parent=1 // pred_fallthru
      _
    %144 = vsyncpa [#allocation3], 1
    %145 = vsyncpa [#allocation6], 1
    %146 = vsyncpa [#allocation4], 1

</llo_original>
